<compile_context>
chip_gen: v5e
topology: v5e:2x2
jax: 0.10.0
libtpu: 0.0.40
codegen_flags: <defaults>
</compile_context>

<pallas_src>
import jax
import jax.numpy as jnp
from jax.experimental import pallas as pl
from jax.experimental.pallas import tpu as pltpu


def lstm_classifier_kernel(x_ref,      # (T*B, D) bf16  time-major input, flattened in wrapper
                           wih_ref,    # (D, 4H)  bf16  input->gates, order [i,f,o,g], g cols pre-scaled x2
                           whh_ref,    # (H, 4H)  bf16  hidden->gates, same layout
                           b_ref,      # (1, 4H)  f32   bias_ih + bias_hh, g cols pre-scaled x2
                           wfc_ref,    # (H, C)   f32   fc weight, pre-transposed
                           bfc_ref,    # (1, C)   f32   fc bias
                           out_ref):   # (B, C)   f32   logits
    B, _ = out_ref.shape
    TB, _ = x_ref.shape
    T = TB // B
    H = whh_ref.shape[0]

    # Hoist weights / biases into vregs once; never re-load inside the recurrence.
    whh = whh_ref[...]
    bias = b_ref[...]
    wfc = wfc_ref[...]
    bfc = bfc_ref[...]

    # Input projection for all timesteps in one lane-dense matmul, off the serial
    # chain.  Result (T*B, 4H) f32 is only 8 KiB -> kept in vregs (no VMEM scratch).
    xw = jnp.dot(x_ref[...], wih_ref[...], preferred_element_type=jnp.float32) + bias

    h = jnp.zeros((B, H), jnp.float32)
    c = jnp.zeros((B, H), jnp.float32)

    # Fully unrolled recurrence (T is small and static) -> static slices into xw,
    # full LLO scheduling visibility across steps.
    for t in range(T):
        gates = xw[t * B:(t + 1) * B, :] + jnp.dot(
            h.astype(jnp.bfloat16), whh, preferred_element_type=jnp.float32)
        sig = jax.nn.sigmoid(gates)               # one full-lane EUP launch per step
        i = sig[:, :H]
        f = sig[:, H:2 * H]
        o = sig[:, 2 * H:3 * H]
        g = 2.0 * sig[:, 3 * H:] - 1.0            # tanh(z) = 2*sigmoid(2z) - 1 (weights pre-scaled)
        c = f * c + i * g
        h = o * jnp.tanh(c)

    out_ref[...] = jnp.dot(h, wfc, preferred_element_type=jnp.float32) + bfc


def lstm_classifier(x, wih, whh, bias, wfc, bfc):
    """x: (B, T, D) float32. Returns logits (B, C) float32."""
    B, T, D = x.shape
    H = whh.shape[0]
    G = whh.shape[1]            # 4H
    C = wfc.shape[1]

    # Time-major flatten + bf16 cast in the wrapper (free HBM-layout plumbing).
    x_flat = jnp.transpose(x, (1, 0, 2)).reshape(T * B, D).astype(jnp.bfloat16)

    flops = 2 * T * B * D * G + 2 * T * B * H * G + 2 * B * H * C
    transcendentals = 2 * T * B * (G + H)     # sigmoid ~ exp+recip, plus tanh(c)
    bytes_accessed = (2 * (T * B * D + D * G + H * G)            # bf16 operands
                      + 4 * (G + H * C + C + B * C))             # f32 operands + out

    vmem = pl.BlockSpec(memory_space=pltpu.MemorySpace.VMEM)
    return pl.pallas_call(
        lstm_classifier_kernel,
        out_shape=jax.ShapeDtypeStruct((B, C), jnp.float32),
        in_specs=[vmem] * 6,
        out_specs=vmem,
        cost_estimate=pl.CostEstimate(flops=flops,
                                      transcendentals=transcendentals,
                                      bytes_accessed=bytes_accessed),
    )(x_flat, wih, whh, bias, wfc, bfc)


def init_raw_params(key, input_size, hidden_size, num_classes):
    """Raw PyTorch-layout params, uniform(-1/sqrt(H), 1/sqrt(H)), gate order [i,f,g,o]."""
    ks = jax.random.split(key, 6)
    bound = 1.0 / jnp.sqrt(jnp.float32(hidden_size))
    u = lambda k, shape: jax.random.uniform(k, shape, jnp.float32, -bound, bound)

    w_ih = u(ks[0], (4, hidden_size, input_size))          # (4, H, D), [i,f,g,o]
    w_hh = u(ks[1], (4, hidden_size, hidden_size))         # (4, H, H), [i,f,g,o]
    b_ih = u(ks[2], (4, hidden_size))
    b_hh = u(ks[3], (4, hidden_size))
    w_fc = u(ks[4], (num_classes, hidden_size))            # (C, H) PyTorch layout
    b_fc = u(ks[5], (num_classes,))
    return w_ih, w_hh, b_ih, b_hh, w_fc, b_fc


def pack_params(w_ih, w_hh, b_ih, b_hh, w_fc, b_fc):
    """Kernel layout: lane-dense concatenated gates reordered [i,f,o,g];
    g-gate columns pre-scaled by 2 (tanh-via-sigmoid fusion); matmul weights bf16."""
    order = jnp.array([0, 1, 3, 2])                        # torch [i,f,g,o] -> [i,f,o,g]
    H = w_hh.shape[1]
    D = w_ih.shape[2]
    wih = jnp.transpose(w_ih[order], (2, 0, 1)).reshape(D, 4 * H)
    whh = jnp.transpose(w_hh[order], (2, 0, 1)).reshape(H, 4 * H)
    bias = (b_ih + b_hh)[order].reshape(1, 4 * H)

    # Exact power-of-two pre-scale of the trailing g block (free at pack time).
    scale = jnp.concatenate([jnp.ones((3 * H,), jnp.float32),
                             jnp.full((H,), 2.0, jnp.float32)])[None, :]
    wih = (wih * scale).astype(jnp.bfloat16)
    whh = (whh * scale).astype(jnp.bfloat16)
    bias = bias * scale                                    # stays f32

    wfc = jnp.transpose(w_fc, (1, 0))                      # (H, C) f32
    bfc = b_fc[None, :]                                    # (1, C) f32
    return wih, whh, bias, wfc, bfc


def reference_lstm_classifier(x, w_ih, w_hh, b_ih, b_hh, w_fc, b_fc):
    """Pure-JAX f32 reference in PyTorch layout / gate order [i,f,g,o]."""
    B, T, D = x.shape
    H = w_hh.shape[1]
    h = jnp.zeros((B, H), jnp.float32)
    c = jnp.zeros((B, H), jnp.float32)
    for t in range(T):
        x_t = x[:, t, :]
        pre = [x_t @ w_ih[k].T + h @ w_hh[k].T + b_ih[k] + b_hh[k] for k in range(4)]
        i = jax.nn.sigmoid(pre[0])
        f = jax.nn.sigmoid(pre[1])
        g = jnp.tanh(pre[2])
        o = jax.nn.sigmoid(pre[3])
        c = f * c + i * g
        h = o * jnp.tanh(c)
    return h @ w_fc.T + b_fc[None, :]


if __name__ == "__main__":
    B, T, D = 2, 8, 16          # batch, sequence length, input_size
    H, C = 32, 2                # hidden_size (4H = 128 lanes), num_classes

    key = jax.random.PRNGKey(0)
    k_x, k_p = jax.random.split(key)
    x = jax.random.normal(k_x, (B, T, D), jnp.float32)

    raw = init_raw_params(k_p, D, H, C)
    packed = pack_params(*raw)

    logits = lstm_classifier(x, *packed)
    jax.block_until_ready(logits)

    ref = reference_lstm_classifier(x, *raw)
    assert logits.shape == (B, C)
    # bf16 MXU inputs with f32 accumulation / f32 elementwise -> relaxed tolerance.
    assert jnp.allclose(logits, ref, atol=3e-2, rtol=3e-2), "mismatch vs JAX reference"

    print("KERNEL_OK")
</pallas_src>

<mosaic_0001>
module attributes {stable_mosaic.version = 11 : i64} {
  func.func @lstm_classifier_kernel(%arg0: memref<16x16xbf16, #tpu.memory_space<vmem>>, %arg1: memref<16x128xbf16, #tpu.memory_space<vmem>>, %arg2: memref<32x128xbf16, #tpu.memory_space<vmem>>, %arg3: memref<1x128xf32, #tpu.memory_space<vmem>>, %arg4: memref<32x2xf32, #tpu.memory_space<vmem>>, %arg5: memref<1x2xf32, #tpu.memory_space<vmem>>, %arg6: memref<2x2xf32, #tpu.memory_space<vmem>>) attributes {dimension_semantics = [], scalar_prefetch = 0 : i64, scratch_operands = 0 : i64, tpu.core_type = #tpu.core_type<tc>} {
    %c0 = arith.constant 0 : index
    %c0_0 = arith.constant 0 : index
    %0 = vector.load %arg2[%c0, %c0_0] : memref<32x128xbf16, #tpu.memory_space<vmem>>, vector<32x128xbf16>
    %c0_1 = arith.constant 0 : index
    %c0_2 = arith.constant 0 : index
    %1 = vector.load %arg3[%c0_1, %c0_2] : memref<1x128xf32, #tpu.memory_space<vmem>>, vector<1x128xf32>
    %c0_3 = arith.constant 0 : index
    %c0_4 = arith.constant 0 : index
    %2 = vector.load %arg4[%c0_3, %c0_4] : memref<32x2xf32, #tpu.memory_space<vmem>>, vector<32x2xf32>
    %c0_5 = arith.constant 0 : index
    %c0_6 = arith.constant 0 : index
    %3 = vector.load %arg5[%c0_5, %c0_6] : memref<1x2xf32, #tpu.memory_space<vmem>>, vector<1x2xf32>
    %c0_7 = arith.constant 0 : index
    %c0_8 = arith.constant 0 : index
    %4 = vector.load %arg0[%c0_7, %c0_8] : memref<16x16xbf16, #tpu.memory_space<vmem>>, vector<16x16xbf16>
    %c0_9 = arith.constant 0 : index
    %c0_10 = arith.constant 0 : index
    %5 = vector.load %arg1[%c0_9, %c0_10] : memref<16x128xbf16, #tpu.memory_space<vmem>>, vector<16x128xbf16>
    %cst = arith.constant dense<0.000000e+00> : vector<16x128xf32>
    %6 = tpu.matmul %4, %5, %cst {dimension_numbers = #tpu.dot_dimension_numbers<[1], [0], [0], [1], [0, 0, 1, 1], [], []>} : vector<16x16xbf16>, vector<16x128xbf16>, vector<16x128xf32> -> vector<16x128xf32>
    %7 = vector.broadcast %1 : vector<1x128xf32> to vector<16x128xf32>
    %8 = arith.addf %6, %7 : vector<16x128xf32>
    %cst_11 = arith.constant 0.000000e+00 : f32
    %9 = vector.broadcast %cst_11 : f32 to vector<2x32xf32>
    %cst_12 = arith.constant 0.000000e+00 : f32
    %10 = vector.broadcast %cst_12 : f32 to vector<2x32xf32>
    %11 = vector.extract_strided_slice %8 {offsets = [0, 0], sizes = [2, 128], strides = [1, 1]} : vector<16x128xf32> to vector<2x128xf32>
    %12 = arith.truncf %9 : vector<2x32xf32> to vector<2x32xbf16>
    %cst_13 = arith.constant dense<0.000000e+00> : vector<2x128xf32>
    %13 = tpu.matmul %12, %0, %cst_13 {dimension_numbers = #tpu.dot_dimension_numbers<[1], [0], [0], [1], [0, 0, 1, 1], [], []>} : vector<2x32xbf16>, vector<32x128xbf16>, vector<2x128xf32> -> vector<2x128xf32>
    %14 = arith.addf %11, %13 : vector<2x128xf32>
    %15 = arith.negf %14 : vector<2x128xf32>
    %16 = math.exp %15 : vector<2x128xf32>
    %cst_14 = arith.constant 1.000000e+00 : f32
    %17 = vector.broadcast %cst_14 : f32 to vector<2x128xf32>
    %18 = arith.addf %17, %16 : vector<2x128xf32>
    %19 = arith.divf %17, %18 : vector<2x128xf32>
    %20 = vector.extract_strided_slice %19 {offsets = [0, 0], sizes = [2, 32], strides = [1, 1]} : vector<2x128xf32> to vector<2x32xf32>
    %21 = vector.extract_strided_slice %19 {offsets = [0, 32], sizes = [2, 32], strides = [1, 1]} : vector<2x128xf32> to vector<2x32xf32>
    %22 = vector.extract_strided_slice %19 {offsets = [0, 64], sizes = [2, 32], strides = [1, 1]} : vector<2x128xf32> to vector<2x32xf32>
    %23 = vector.extract_strided_slice %19 {offsets = [0, 96], sizes = [2, 32], strides = [1, 1]} : vector<2x128xf32> to vector<2x32xf32>
    %cst_15 = arith.constant 2.000000e+00 : f32
    %24 = vector.broadcast %cst_15 : f32 to vector<2x32xf32>
    %25 = arith.mulf %24, %23 : vector<2x32xf32>
    %cst_16 = arith.constant 1.000000e+00 : f32
    %26 = vector.broadcast %cst_16 : f32 to vector<2x32xf32>
    %27 = arith.subf %25, %26 : vector<2x32xf32>
    %28 = arith.mulf %21, %10 : vector<2x32xf32>
    %29 = arith.mulf %20, %27 : vector<2x32xf32>
    %30 = arith.addf %28, %29 : vector<2x32xf32>
    %31 = math.tanh %30 : vector<2x32xf32>
    %32 = arith.mulf %22, %31 : vector<2x32xf32>
    %33 = vector.extract_strided_slice %8 {offsets = [2, 0], sizes = [2, 128], strides = [1, 1]} : vector<16x128xf32> to vector<2x128xf32>
    %34 = arith.truncf %32 : vector<2x32xf32> to vector<2x32xbf16>
    %cst_17 = arith.constant dense<0.000000e+00> : vector<2x128xf32>
    %35 = tpu.matmul %34, %0, %cst_17 {dimension_numbers = #tpu.dot_dimension_numbers<[1], [0], [0], [1], [0, 0, 1, 1], [], []>} : vector<2x32xbf16>, vector<32x128xbf16>, vector<2x128xf32> -> vector<2x128xf32>
    %36 = arith.addf %33, %35 : vector<2x128xf32>
    %37 = arith.negf %36 : vector<2x128xf32>
    %38 = math.exp %37 : vector<2x128xf32>
    %cst_18 = arith.constant 1.000000e+00 : f32
    %39 = vector.broadcast %cst_18 : f32 to vector<2x128xf32>
    %40 = arith.addf %39, %38 : vector<2x128xf32>
    %41 = arith.divf %39, %40 : vector<2x128xf32>
    %42 = vector.extract_strided_slice %41 {offsets = [0, 0], sizes = [2, 32], strides = [1, 1]} : vector<2x128xf32> to vector<2x32xf32>
    %43 = vector.extract_strided_slice %41 {offsets = [0, 32], sizes = [2, 32], strides = [1, 1]} : vector<2x128xf32> to vector<2x32xf32>
    %44 = vector.extract_strided_slice %41 {offsets = [0, 64], sizes = [2, 32], strides = [1, 1]} : vector<2x128xf32> to vector<2x32xf32>
    %45 = vector.extract_strided_slice %41 {offsets = [0, 96], sizes = [2, 32], strides = [1, 1]} : vector<2x128xf32> to vector<2x32xf32>
    %cst_19 = arith.constant 2.000000e+00 : f32
    %46 = vector.broadcast %cst_19 : f32 to vector<2x32xf32>
    %47 = arith.mulf %46, %45 : vector<2x32xf32>
    %cst_20 = arith.constant 1.000000e+00 : f32
    %48 = vector.broadcast %cst_20 : f32 to vector<2x32xf32>
    %49 = arith.subf %47, %48 : vector<2x32xf32>
    %50 = arith.mulf %43, %30 : vector<2x32xf32>
    %51 = arith.mulf %42, %49 : vector<2x32xf32>
    %52 = arith.addf %50, %51 : vector<2x32xf32>
    %53 = math.tanh %52 : vector<2x32xf32>
    %54 = arith.mulf %44, %53 : vector<2x32xf32>
    %55 = vector.extract_strided_slice %8 {offsets = [4, 0], sizes = [2, 128], strides = [1, 1]} : vector<16x128xf32> to vector<2x128xf32>
    %56 = arith.truncf %54 : vector<2x32xf32> to vector<2x32xbf16>
    %cst_21 = arith.constant dense<0.000000e+00> : vector<2x128xf32>
    %57 = tpu.matmul %56, %0, %cst_21 {dimension_numbers = #tpu.dot_dimension_numbers<[1], [0], [0], [1], [0, 0, 1, 1], [], []>} : vector<2x32xbf16>, vector<32x128xbf16>, vector<2x128xf32> -> vector<2x128xf32>
    %58 = arith.addf %55, %57 : vector<2x128xf32>
    %59 = arith.negf %58 : vector<2x128xf32>
    %60 = math.exp %59 : vector<2x128xf32>
    %cst_22 = arith.constant 1.000000e+00 : f32
    %61 = vector.broadcast %cst_22 : f32 to vector<2x128xf32>
    %62 = arith.addf %61, %60 : vector<2x128xf32>
    %63 = arith.divf %61, %62 : vector<2x128xf32>
    %64 = vector.extract_strided_slice %63 {offsets = [0, 0], sizes = [2, 32], strides = [1, 1]} : vector<2x128xf32> to vector<2x32xf32>
    %65 = vector.extract_strided_slice %63 {offsets = [0, 32], sizes = [2, 32], strides = [1, 1]} : vector<2x128xf32> to vector<2x32xf32>
    %66 = vector.extract_strided_slice %63 {offsets = [0, 64], sizes = [2, 32], strides = [1, 1]} : vector<2x128xf32> to vector<2x32xf32>
    %67 = vector.extract_strided_slice %63 {offsets = [0, 96], sizes = [2, 32], strides = [1, 1]} : vector<2x128xf32> to vector<2x32xf32>
    %cst_23 = arith.constant 2.000000e+00 : f32
    %68 = vector.broadcast %cst_23 : f32 to vector<2x32xf32>
    %69 = arith.mulf %68, %67 : vector<2x32xf32>
    %cst_24 = arith.constant 1.000000e+00 : f32
    %70 = vector.broadcast %cst_24 : f32 to vector<2x32xf32>
    %71 = arith.subf %69, %70 : vector<2x32xf32>
    %72 = arith.mulf %65, %52 : vector<2x32xf32>
    %73 = arith.mulf %64, %71 : vector<2x32xf32>
    %74 = arith.addf %72, %73 : vector<2x32xf32>
    %75 = math.tanh %74 : vector<2x32xf32>
    %76 = arith.mulf %66, %75 : vector<2x32xf32>
    %77 = vector.extract_strided_slice %8 {offsets = [6, 0], sizes = [2, 128], strides = [1, 1]} : vector<16x128xf32> to vector<2x128xf32>
    %78 = arith.truncf %76 : vector<2x32xf32> to vector<2x32xbf16>
    %cst_25 = arith.constant dense<0.000000e+00> : vector<2x128xf32>
    %79 = tpu.matmul %78, %0, %cst_25 {dimension_numbers = #tpu.dot_dimension_numbers<[1], [0], [0], [1], [0, 0, 1, 1], [], []>} : vector<2x32xbf16>, vector<32x128xbf16>, vector<2x128xf32> -> vector<2x128xf32>
    %80 = arith.addf %77, %79 : vector<2x128xf32>
    %81 = arith.negf %80 : vector<2x128xf32>
    %82 = math.exp %81 : vector<2x128xf32>
    %cst_26 = arith.constant 1.000000e+00 : f32
    %83 = vector.broadcast %cst_26 : f32 to vector<2x128xf32>
    %84 = arith.addf %83, %82 : vector<2x128xf32>
    %85 = arith.divf %83, %84 : vector<2x128xf32>
    %86 = vector.extract_strided_slice %85 {offsets = [0, 0], sizes = [2, 32], strides = [1, 1]} : vector<2x128xf32> to vector<2x32xf32>
    %87 = vector.extract_strided_slice %85 {offsets = [0, 32], sizes = [2, 32], strides = [1, 1]} : vector<2x128xf32> to vector<2x32xf32>
    %88 = vector.extract_strided_slice %85 {offsets = [0, 64], sizes = [2, 32], strides = [1, 1]} : vector<2x128xf32> to vector<2x32xf32>
    %89 = vector.extract_strided_slice %85 {offsets = [0, 96], sizes = [2, 32], strides = [1, 1]} : vector<2x128xf32> to vector<2x32xf32>
    %cst_27 = arith.constant 2.000000e+00 : f32
    %90 = vector.broadcast %cst_27 : f32 to vector<2x32xf32>
    %91 = arith.mulf %90, %89 : vector<2x32xf32>
    %cst_28 = arith.constant 1.000000e+00 : f32
    %92 = vector.broadcast %cst_28 : f32 to vector<2x32xf32>
    %93 = arith.subf %91, %92 : vector<2x32xf32>
    %94 = arith.mulf %87, %74 : vector<2x32xf32>
    %95 = arith.mulf %86, %93 : vector<2x32xf32>
    %96 = arith.addf %94, %95 : vector<2x32xf32>
    %97 = math.tanh %96 : vector<2x32xf32>
    %98 = arith.mulf %88, %97 : vector<2x32xf32>
    %99 = vector.extract_strided_slice %8 {offsets = [8, 0], sizes = [2, 128], strides = [1, 1]} : vector<16x128xf32> to vector<2x128xf32>
    %100 = arith.truncf %98 : vector<2x32xf32> to vector<2x32xbf16>
    %cst_29 = arith.constant dense<0.000000e+00> : vector<2x128xf32>
    %101 = tpu.matmul %100, %0, %cst_29 {dimension_numbers = #tpu.dot_dimension_numbers<[1], [0], [0], [1], [0, 0, 1, 1], [], []>} : vector<2x32xbf16>, vector<32x128xbf16>, vector<2x128xf32> -> vector<2x128xf32>
    %102 = arith.addf %99, %101 : vector<2x128xf32>
    %103 = arith.negf %102 : vector<2x128xf32>
    %104 = math.exp %103 : vector<2x128xf32>
    %cst_30 = arith.constant 1.000000e+00 : f32
    %105 = vector.broadcast %cst_30 : f32 to vector<2x128xf32>
    %106 = arith.addf %105, %104 : vector<2x128xf32>
    %107 = arith.divf %105, %106 : vector<2x128xf32>
    %108 = vector.extract_strided_slice %107 {offsets = [0, 0], sizes = [2, 32], strides = [1, 1]} : vector<2x128xf32> to vector<2x32xf32>
    %109 = vector.extract_strided_slice %107 {offsets = [0, 32], sizes = [2, 32], strides = [1, 1]} : vector<2x128xf32> to vector<2x32xf32>
    %110 = vector.extract_strided_slice %107 {offsets = [0, 64], sizes = [2, 32], strides = [1, 1]} : vector<2x128xf32> to vector<2x32xf32>
    %111 = vector.extract_strided_slice %107 {offsets = [0, 96], sizes = [2, 32], strides = [1, 1]} : vector<2x128xf32> to vector<2x32xf32>
    %cst_31 = arith.constant 2.000000e+00 : f32
    %112 = vector.broadcast %cst_31 : f32 to vector<2x32xf32>
    %113 = arith.mulf %112, %111 : vector<2x32xf32>
    %cst_32 = arith.constant 1.000000e+00 : f32
    %114 = vector.broadcast %cst_32 : f32 to vector<2x32xf32>
    %115 = arith.subf %113, %114 : vector<2x32xf32>
    %116 = arith.mulf %109, %96 : vector<2x32xf32>
    %117 = arith.mulf %108, %115 : vector<2x32xf32>
    %118 = arith.addf %116, %117 : vector<2x32xf32>
    %119 = math.tanh %118 : vector<2x32xf32>
    %120 = arith.mulf %110, %119 : vector<2x32xf32>
    %121 = vector.extract_strided_slice %8 {offsets = [10, 0], sizes = [2, 128], strides = [1, 1]} : vector<16x128xf32> to vector<2x128xf32>
    %122 = arith.truncf %120 : vector<2x32xf32> to vector<2x32xbf16>
    %cst_33 = arith.constant dense<0.000000e+00> : vector<2x128xf32>
    %123 = tpu.matmul %122, %0, %cst_33 {dimension_numbers = #tpu.dot_dimension_numbers<[1], [0], [0], [1], [0, 0, 1, 1], [], []>} : vector<2x32xbf16>, vector<32x128xbf16>, vector<2x128xf32> -> vector<2x128xf32>
    %124 = arith.addf %121, %123 : vector<2x128xf32>
    %125 = arith.negf %124 : vector<2x128xf32>
    %126 = math.exp %125 : vector<2x128xf32>
    %cst_34 = arith.constant 1.000000e+00 : f32
    %127 = vector.broadcast %cst_34 : f32 to vector<2x128xf32>
    %128 = arith.addf %127, %126 : vector<2x128xf32>
    %129 = arith.divf %127, %128 : vector<2x128xf32>
    %130 = vector.extract_strided_slice %129 {offsets = [0, 0], sizes = [2, 32], strides = [1, 1]} : vector<2x128xf32> to vector<2x32xf32>
    %131 = vector.extract_strided_slice %129 {offsets = [0, 32], sizes = [2, 32], strides = [1, 1]} : vector<2x128xf32> to vector<2x32xf32>
    %132 = vector.extract_strided_slice %129 {offsets = [0, 64], sizes = [2, 32], strides = [1, 1]} : vector<2x128xf32> to vector<2x32xf32>
    %133 = vector.extract_strided_slice %129 {offsets = [0, 96], sizes = [2, 32], strides = [1, 1]} : vector<2x128xf32> to vector<2x32xf32>
    %cst_35 = arith.constant 2.000000e+00 : f32
    %134 = vector.broadcast %cst_35 : f32 to vector<2x32xf32>
    %135 = arith.mulf %134, %133 : vector<2x32xf32>
    %cst_36 = arith.constant 1.000000e+00 : f32
    %136 = vector.broadcast %cst_36 : f32 to vector<2x32xf32>
    %137 = arith.subf %135, %136 : vector<2x32xf32>
    %138 = arith.mulf %131, %118 : vector<2x32xf32>
    %139 = arith.mulf %130, %137 : vector<2x32xf32>
    %140 = arith.addf %138, %139 : vector<2x32xf32>
    %141 = math.tanh %140 : vector<2x32xf32>
    %142 = arith.mulf %132, %141 : vector<2x32xf32>
    %143 = vector.extract_strided_slice %8 {offsets = [12, 0], sizes = [2, 128], strides = [1, 1]} : vector<16x128xf32> to vector<2x128xf32>
    %144 = arith.truncf %142 : vector<2x32xf32> to vector<2x32xbf16>
    %cst_37 = arith.constant dense<0.000000e+00> : vector<2x128xf32>
    %145 = tpu.matmul %144, %0, %cst_37 {dimension_numbers = #tpu.dot_dimension_numbers<[1], [0], [0], [1], [0, 0, 1, 1], [], []>} : vector<2x32xbf16>, vector<32x128xbf16>, vector<2x128xf32> -> vector<2x128xf32>
    %146 = arith.addf %143, %145 : vector<2x128xf32>
    %147 = arith.negf %146 : vector<2x128xf32>
    %148 = math.exp %147 : vector<2x128xf32>
    %cst_38 = arith.constant 1.000000e+00 : f32
    %149 = vector.broadcast %cst_38 : f32 to vector<2x128xf32>
    %150 = arith.addf %149, %148 : vector<2x128xf32>
    %151 = arith.divf %149, %150 : vector<2x128xf32>
    %152 = vector.extract_strided_slice %151 {offsets = [0, 0], sizes = [2, 32], strides = [1, 1]} : vector<2x128xf32> to vector<2x32xf32>
    %153 = vector.extract_strided_slice %151 {offsets = [0, 32], sizes = [2, 32], strides = [1, 1]} : vector<2x128xf32> to vector<2x32xf32>
    %154 = vector.extract_strided_slice %151 {offsets = [0, 64], sizes = [2, 32], strides = [1, 1]} : vector<2x128xf32> to vector<2x32xf32>
    %155 = vector.extract_strided_slice %151 {offsets = [0, 96], sizes = [2, 32], strides = [1, 1]} : vector<2x128xf32> to vector<2x32xf32>
    %cst_39 = arith.constant 2.000000e+00 : f32
    %156 = vector.broadcast %cst_39 : f32 to vector<2x32xf32>
    %157 = arith.mulf %156, %155 : vector<2x32xf32>
    %cst_40 = arith.constant 1.000000e+00 : f32
    %158 = vector.broadcast %cst_40 : f32 to vector<2x32xf32>
    %159 = arith.subf %157, %158 : vector<2x32xf32>
    %160 = arith.mulf %153, %140 : vector<2x32xf32>
    %161 = arith.mulf %152, %159 : vector<2x32xf32>
    %162 = arith.addf %160, %161 : vector<2x32xf32>
    %163 = math.tanh %162 : vector<2x32xf32>
    %164 = arith.mulf %154, %163 : vector<2x32xf32>
    %165 = vector.extract_strided_slice %8 {offsets = [14, 0], sizes = [2, 128], strides = [1, 1]} : vector<16x128xf32> to vector<2x128xf32>
    %166 = arith.truncf %164 : vector<2x32xf32> to vector<2x32xbf16>
    %cst_41 = arith.constant dense<0.000000e+00> : vector<2x128xf32>
    %167 = tpu.matmul %166, %0, %cst_41 {dimension_numbers = #tpu.dot_dimension_numbers<[1], [0], [0], [1], [0, 0, 1, 1], [], []>} : vector<2x32xbf16>, vector<32x128xbf16>, vector<2x128xf32> -> vector<2x128xf32>
    %168 = arith.addf %165, %167 : vector<2x128xf32>
    %169 = arith.negf %168 : vector<2x128xf32>
    %170 = math.exp %169 : vector<2x128xf32>
    %cst_42 = arith.constant 1.000000e+00 : f32
    %171 = vector.broadcast %cst_42 : f32 to vector<2x128xf32>
    %172 = arith.addf %171, %170 : vector<2x128xf32>
    %173 = arith.divf %171, %172 : vector<2x128xf32>
    %174 = vector.extract_strided_slice %173 {offsets = [0, 0], sizes = [2, 32], strides = [1, 1]} : vector<2x128xf32> to vector<2x32xf32>
    %175 = vector.extract_strided_slice %173 {offsets = [0, 32], sizes = [2, 32], strides = [1, 1]} : vector<2x128xf32> to vector<2x32xf32>
    %176 = vector.extract_strided_slice %173 {offsets = [0, 64], sizes = [2, 32], strides = [1, 1]} : vector<2x128xf32> to vector<2x32xf32>
    %177 = vector.extract_strided_slice %173 {offsets = [0, 96], sizes = [2, 32], strides = [1, 1]} : vector<2x128xf32> to vector<2x32xf32>
    %cst_43 = arith.constant 2.000000e+00 : f32
    %178 = vector.broadcast %cst_43 : f32 to vector<2x32xf32>
    %179 = arith.mulf %178, %177 : vector<2x32xf32>
    %cst_44 = arith.constant 1.000000e+00 : f32
    %180 = vector.broadcast %cst_44 : f32 to vector<2x32xf32>
    %181 = arith.subf %179, %180 : vector<2x32xf32>
    %182 = arith.mulf %175, %162 : vector<2x32xf32>
    %183 = arith.mulf %174, %181 : vector<2x32xf32>
    %184 = arith.addf %182, %183 : vector<2x32xf32>
    %185 = math.tanh %184 : vector<2x32xf32>
    %186 = arith.mulf %176, %185 : vector<2x32xf32>
    %cst_45 = arith.constant dense<0.000000e+00> : vector<2x2xf32>
    %187 = tpu.matmul %186, %2, %cst_45 {dimension_numbers = #tpu.dot_dimension_numbers<[1], [0], [0], [1], [0, 0, 1, 1], [], []>} : vector<2x32xf32>, vector<32x2xf32>, vector<2x2xf32> -> vector<2x2xf32>
    %188 = vector.broadcast %3 : vector<1x2xf32> to vector<2x2xf32>
    %189 = arith.addf %187, %188 : vector<2x2xf32>
    %c0_46 = arith.constant 0 : index
    %c0_47 = arith.constant 0 : index
    %190 = vector.load %arg6[%c0_46, %c0_47] : memref<2x2xf32, #tpu.memory_space<vmem>>, vector<2x2xf32>
    tpu.vector_store %arg6[%c0_46, %c0_47], %189 {strides = array<i32>} : memref<2x2xf32, #tpu.memory_space<vmem>>, vector<2x2xf32>,
    return
  }
}

</mosaic_0001>

<llo_original>
// kernel: tpu_custom_call.1
$region0: #{tpu_custom_call.1}
  #allocation0 [shape = 'u32[]', space=smem, size = 0x4, offset = 0x4, fixed_abs, tag = 'smem constant byte address 0x4 - core index']
  #allocation1 [shape = 'u32[72,128]{1,0:T(1,128)}', space=vmem, size = 0x9000, scoped, tag = 'internal scratch']
  %s0 = inlined_call_operand.vmem [shape: bf16[16,16], index: 0, kind: input, shape index: {}]
  %s1 = inlined_call_operand.vmem [shape: bf16[16,128], index: 1, kind: input, shape index: {}]
  %s2 = inlined_call_operand.vmem [shape: bf16[32,128], index: 2, kind: input, shape index: {}]
  %s3 = inlined_call_operand.vmem [shape: f32[1,128], index: 3, kind: input, shape index: {}]
  %s4 = inlined_call_operand.vmem [shape: f32[32,2], index: 4, kind: input, shape index: {}]
  %s5 = inlined_call_operand.vmem [shape: f32[1,2], index: 5, kind: input, shape index: {}]
  %s6 = inlined_call_operand.hbm [shape: f32[2,2], index: 6, kind: output, shape index: {}]
  %s7 = sld [smem:[#allocation0]]
  $region34: #{tpu_custom_call.1} parent=0
    _
  %s9 = ssub.s32 1, %s7
  %s10 = scalar_select 0, %s9, %s7
  $region1: #{tpu_custom_call.1} parent=0
    #allocation2 [shape = 'u8[1024]{0}', space=vmem, size = 0x400, scoped, tag = 'output window, operand 0, single buffered']
    #allocation3 [shape = 's32[1]{0}', space=sflag, size = 0x4, scoped, tag = 'scoped memory for tpu_custom_call.1']
    %11 = vsyncpa [#allocation3], 0
    // Predicated region
    $region2: #{tpu_custom_call.1} parent=1 // pred_check
      _
    $region3: #{tpu_custom_call.1} parent=1 // pred_check_branch
      %13 = sbr.rel (0) target = $region5
    $region4: #{tpu_custom_call.1} parent=1 // pred_region
      _
    $region5: #{tpu_custom_call.1} parent=1 // pred_fallthru
      _
    // Predicated region
    $region6: #{tpu_custom_call.1} parent=1 // pred_check
      _
    $region7: #{tpu_custom_call.1} parent=1 // pred_check_branch
      %15 = sbr.rel (0) target = $region9
    $region8: #{tpu_custom_call.1} parent=1 // pred_region
      _
    $region9: #{tpu_custom_call.1} parent=1 // pred_fallthru
      _
    // Predicated region
    $region10: #{tpu_custom_call.1} parent=1 // pred_check
      _
    $region11: #{tpu_custom_call.1} parent=1 // pred_check_branch
      %17 = sbr.rel (0) target = $region13
    $region12: #{tpu_custom_call.1} parent=1 // pred_region
      _
    $region13: #{tpu_custom_call.1} parent=1 // pred_fallthru
      _
    // Predicated region
    $region14: #{tpu_custom_call.1} parent=1 // pred_check
      _
    $region15: #{tpu_custom_call.1} parent=1 // pred_check_branch
      %19 = sbr.rel (0) target = $region17
    $region16: #{tpu_custom_call.1} parent=1 // pred_region
      _
    $region17: #{tpu_custom_call.1} parent=1 // pred_fallthru
      _
    // Predicated region
    $region18: #{tpu_custom_call.1} parent=1 // pred_check
      _
    $region19: #{tpu_custom_call.1} parent=1 // pred_check_branch
      %21 = sbr.rel (0) target = $region21
    $region20: #{tpu_custom_call.1} parent=1 // pred_region
      _
    $region21: #{tpu_custom_call.1} parent=1 // pred_fallthru
      _
    // Predicated region
    $region22: #{tpu_custom_call.1} parent=1 // pred_check
      _
    $region23: #{tpu_custom_call.1} parent=1 // pred_check_branch
      %23 = sbr.rel (0) target = $region25
    $region24: #{tpu_custom_call.1} parent=1 // pred_region
      _
    $region25: #{tpu_custom_call.1} parent=1 // pred_fallthru
      _
    %v25 = vld [vmem:[%s2] sm:$0xf]
    %v26 = vld [vmem:[%s2 + $0x4] sm:$0xf]
    %v27 = vld [vmem:[%s2 + $0x8] sm:$0xf]
    %v28 = vld [vmem:[%s2 + $0xc] sm:$0xf]
    %v29 = vld [vmem:[%s3] sm:$0x1]
    %v30 = vld [vmem:[%s4] sm:$0xff]
    %v31 = vld [vmem:[%s4 + $0x8] sm:$0xff]
    %v32 = vld [vmem:[%s4 + $0x10] sm:$0xff]
    %v33 = vld [vmem:[%s4 + $0x18] sm:$0xff]
    %v34 = vld [vmem:[%s5] sm:$0x1]
    %v35 = vld [vmem:[%s0] sm:$0xf]
    %v36 = vld [vmem:[%s0 + $0x4] sm:$0xf]
    %v37 = vld [vmem:[%s1] sm:$0xf]
    %v38 = vld [vmem:[%s1 + $0x4] sm:$0xf]
    %v40 = vperm.slane %v29, 0
    %v44 = vunpack.c.l.b16 %v35
    %v45 = vunpack.c.l.b16 %v36
    %v46 = vpack.c.b16 %v45, %v44
    %v49 = vunpack.c.l.b16 %v37
    %v50 = vunpack.c.l.b16 %v38
    %v51 = vpack.c.b16 %v50, %v49
    %vm53 = vcmask 130048
    %v55 = vsel %vm53, %v46, 0
    %57 = vmatpush.bf16.msra.mxu0 0
    %58 = vmatpush.bf16.msra.mxu0 0
    %59 = vmatpush.bf16.msra.mxu0 0
    %60 = vmatpush.bf16.msra.mxu0 0
    %61 = vmatpush.bf16.msra.mxu0 0
    %62 = vmatpush.bf16.msra.mxu0 0
    %63 = vmatpush.bf16.msra.mxu0 0
    %64 = vmatpush.bf16.msra.mxu0 %v51
    %65 = vmatmul.bf16.gmra.mxu0 %v55
    %v66 = vpop.f32.mrf.mxu0
    %v67 = vadd.f32 %v40, %v66
    %v68 = vpop.f32.mrf.mxu0
    %v69 = vadd.f32 %v40, %v68
    %70 = vdwg.mxu0
    %v75 = vunpack.c.l.b16 %v25
    %v76 = vunpack.c.l.b16 %v26
    %v77 = vunpack.c.l.b16 %v27
    %v78 = vunpack.c.l.b16 %v28
    %v79 = vpack.c.b16 %v76, %v75
    %v80 = vpack.c.b16 %v78, %v77
    %vm83 = vcmask 261120
    %v85 = vsel %vm83, 0, 0
    %87 = vmatpush.bf16.msra.mxu0 0
    %88 = vmatpush.bf16.msra.mxu0 0
    %89 = vmatpush.bf16.msra.mxu0 0
    %90 = vmatpush.bf16.msra.mxu0 0
    %91 = vmatpush.bf16.msra.mxu0 0
    %92 = vmatpush.bf16.msra.mxu0 0
    %93 = vmatpush.bf16.msra.mxu0 %v80
    %94 = vmatpush.bf16.msra.mxu0 %v79
    %95 = vmatmul.bf16.gmra.mxu0 %v85
    %v96 = vpop.f32.mrf.mxu0
    %v97 = vadd.f32 0.0, %v96
    %v98 = vpop.f32.mrf.mxu0
    %99 = vdwg.mxu0
    %v100 = vadd.f32 %v67, %v97
    %v101 = vxor.u32 %v100, 2147483648
    %v102 = vmul.f32 %v101, 1.442695
    %v103 = vpow.pop %v102
    %v104 = vadd.f32 %v103, 1.0
    %v105 = vrcp.pop %v104
    %v106 = vmul.f32 %v104, %v105
    %v107 = vsub.f32 1.0, %v106
    %v108 = vmul.f32 %v105, %v107
    %v109 = vadd.f32 %v105, %v108
    %vm110 = vweird.f32 %v104
    %vm111 = vweird.f32 %v105
    %vm112 = vmor %vm110, %vm111
    %v113 = vsel %vm112, %v105, %v109
    %v114 = vand.u32 2147483647, %v104
    %vm115 = vcmp.eq.f32.partialorder %v114, 8.507059e+37
    %v116 = vand.u32 %v104, 2147483648
    %v117 = vor.u32 1.1754944e-38, %v116
    %v118 = vsel %vm115, %v117, %v113
    %v119 = vmul.f32 1.0, %v118
    %v120 = vmul.f32 %v119, 2.0
    %v121 = vsub.f32 %v120, 1.0
    %v122 = vmul.f32 %v119, 0.0
    %124 = vrot.lane.b32.xlu0 %v121, 32
    %v125 = vpop.permute.xlu0 %124
    %v127 = vmul.f32 %v119, %v125
    %129 = vrot.lane.b32.xlu0 %v127, 32
    %v130 = vpop.permute.xlu0 %129
    %v132 = vadd.f32 %v122, %v130
    %v133 = vtanh.pop %v132
    %135 = vrot.lane.b32.xlu0 %v133, 32
    %v136 = vpop.permute.xlu0 %135
    %v138 = vmul.f32 %v119, %v136
    %v139 = vpack.c.bf16 %v138, %v138
    %141 = vrot.lane.b32.xlu0 %v139, 64
    %v142 = vpop.permute.xlu0 %141
    %v144 = vsel %vm83, %v142, 0
    %146 = vmatpush.bf16.msra.mxu0 0
    %147 = vmatpush.bf16.msra.mxu0 0
    %148 = vmatpush.bf16.msra.mxu0 0
    %149 = vmatpush.bf16.msra.mxu0 0
    %150 = vmatpush.bf16.msra.mxu0 0
    %151 = vmatpush.bf16.msra.mxu0 0
    %152 = vmatpush.bf16.msra.mxu0 %v80
    %153 = vmatpush.bf16.msra.mxu0 %v79
    %154 = vmatmul.bf16.gmra.mxu0 %v144
    %v155 = vpop.f32.mrf.mxu0
    %v156 = vadd.f32 0.0, %v155
    %v157 = vpop.f32.mrf.mxu0
    %158 = vdwg.mxu0
    %v160 = vrot.slane %v156, 6
    %v162 = vadd.f32 %v67, %v160
    %v163 = vxor.u32 %v162, 2147483648
    %v164 = vmul.f32 %v163, 1.442695
    %v165 = vpow.pop %v164
    %v166 = vadd.f32 %v165, 1.0
    %v167 = vrcp.pop %v166
    %v168 = vmul.f32 %v166, %v167
    %v169 = vsub.f32 1.0, %v168
    %v170 = vmul.f32 %v167, %v169
    %v171 = vadd.f32 %v167, %v170
    %vm172 = vweird.f32 %v166
    %vm173 = vweird.f32 %v167
    %vm174 = vmor %vm172, %vm173
    %v175 = vsel %vm174, %v167, %v171
    %v176 = vand.u32 2147483647, %v166
    %vm177 = vcmp.eq.f32.partialorder %v176, 8.507059e+37
    %v178 = vand.u32 %v166, 2147483648
    %v179 = vor.u32 1.1754944e-38, %v178
    %v180 = vsel %vm177, %v179, %v175
    %v181 = vmul.f32 1.0, %v180
    %v182 = vmul.f32 %v181, 2.0
    %v183 = vsub.f32 %v182, 1.0
    %v185 = vrot.slane %v132, 6
    %v187 = vmul.f32 %v181, %v185
    %189 = vrot.lane.b32.xlu0 %v183, 32
    %v190 = vpop.permute.xlu0 %189
    %v192 = vmul.f32 %v181, %v190
    %194 = vrot.lane.b32.xlu0 %v192, 32
    %v195 = vpop.permute.xlu0 %194
    %v197 = vadd.f32 %v187, %v195
    %v198 = vtanh.pop %v197
    %200 = vrot.lane.b32.xlu0 %v198, 32
    %v201 = vpop.permute.xlu0 %200
    %v203 = vmul.f32 %v181, %v201
    %v204 = vpack.c.bf16 %v203, %v203
    %v206 = vrot.slane %v204, 1
    %207 = vrot.lane.b32.xlu0 %v206, 64
    %v208 = vpop.permute.xlu0 %207
    %v210 = vsel %vm83, %v208, 0
    %212 = vmatpush.bf16.msra.mxu0 0
    %213 = vmatpush.bf16.msra.mxu0 0
    %214 = vmatpush.bf16.msra.mxu0 0
    %215 = vmatpush.bf16.msra.mxu0 0
    %216 = vmatpush.bf16.msra.mxu0 0
    %217 = vmatpush.bf16.msra.mxu0 0
    %218 = vmatpush.bf16.msra.mxu0 %v80
    %219 = vmatpush.bf16.msra.mxu0 %v79
    %220 = vmatmul.bf16.gmra.mxu0 %v210
    %v221 = vpop.f32.mrf.mxu0
    %v222 = vadd.f32 0.0, %v221
    %v223 = vpop.f32.mrf.mxu0
    %224 = vdwg.mxu0
    %v226 = vrot.slane %v222, 4
    %v228 = vadd.f32 %v67, %v226
    %v229 = vxor.u32 %v228, 2147483648
    %v230 = vmul.f32 %v229, 1.442695
    %v231 = vpow.pop %v230
    %v232 = vadd.f32 %v231, 1.0
    %v233 = vrcp.pop %v232
    %v234 = vmul.f32 %v232, %v233
    %v235 = vsub.f32 1.0, %v234
    %v236 = vmul.f32 %v233, %v235
    %v237 = vadd.f32 %v233, %v236
    %vm238 = vweird.f32 %v232
    %vm239 = vweird.f32 %v233
    %vm240 = vmor %vm238, %vm239
    %v241 = vsel %vm240, %v233, %v237
    %v242 = vand.u32 2147483647, %v232
    %vm243 = vcmp.eq.f32.partialorder %v242, 8.507059e+37
    %v244 = vand.u32 %v232, 2147483648
    %v245 = vor.u32 1.1754944e-38, %v244
    %v246 = vsel %vm243, %v245, %v241
    %v247 = vmul.f32 1.0, %v246
    %v248 = vmul.f32 %v247, 2.0
    %v249 = vsub.f32 %v248, 1.0
    %v251 = vrot.slane %v197, 6
    %v253 = vmul.f32 %v247, %v251
    %255 = vrot.lane.b32.xlu0 %v249, 32
    %v256 = vpop.permute.xlu0 %255
    %v258 = vmul.f32 %v247, %v256
    %260 = vrot.lane.b32.xlu0 %v258, 32
    %v261 = vpop.permute.xlu0 %260
    %v263 = vadd.f32 %v253, %v261
    %v264 = vtanh.pop %v263
    %266 = vrot.lane.b32.xlu0 %v264, 32
    %v267 = vpop.permute.xlu0 %266
    %v269 = vmul.f32 %v247, %v267
    %v270 = vpack.c.bf16 %v269, %v269
    %v272 = vrot.slane %v270, 2
    %273 = vrot.lane.b32.xlu0 %v272, 64
    %v274 = vpop.permute.xlu0 %273
    %v276 = vsel %vm83, %v274, 0
    %278 = vmatpush.bf16.msra.mxu0 0
    %279 = vmatpush.bf16.msra.mxu0 0
    %280 = vmatpush.bf16.msra.mxu0 0
    %281 = vmatpush.bf16.msra.mxu0 0
    %282 = vmatpush.bf16.msra.mxu0 0
    %283 = vmatpush.bf16.msra.mxu0 0
    %284 = vmatpush.bf16.msra.mxu0 %v80
    %285 = vmatpush.bf16.msra.mxu0 %v79
    %286 = vmatmul.bf16.gmra.mxu0 %v276
    %v287 = vpop.f32.mrf.mxu0
    %v288 = vadd.f32 0.0, %v287
    %v289 = vpop.f32.mrf.mxu0
    %290 = vdwg.mxu0
    %v292 = vrot.slane %v288, 2
    %v294 = vadd.f32 %v67, %v292
    %v295 = vxor.u32 %v294, 2147483648
    %v296 = vmul.f32 %v295, 1.442695
    %v297 = vpow.pop %v296
    %v298 = vadd.f32 %v297, 1.0
    %v299 = vrcp.pop %v298
    %v300 = vmul.f32 %v298, %v299
    %v301 = vsub.f32 1.0, %v300
    %v302 = vmul.f32 %v299, %v301
    %v303 = vadd.f32 %v299, %v302
    %vm304 = vweird.f32 %v298
    %vm305 = vweird.f32 %v299
    %vm306 = vmor %vm304, %vm305
    %v307 = vsel %vm306, %v299, %v303
    %v308 = vand.u32 2147483647, %v298
    %vm309 = vcmp.eq.f32.partialorder %v308, 8.507059e+37
    %v310 = vand.u32 %v298, 2147483648
    %v311 = vor.u32 1.1754944e-38, %v310
    %v312 = vsel %vm309, %v311, %v307
    %v313 = vmul.f32 1.0, %v312
    %v314 = vmul.f32 %v313, 2.0
    %v315 = vsub.f32 %v314, 1.0
    %v317 = vrot.slane %v263, 6
    %v319 = vmul.f32 %v313, %v317
    %321 = vrot.lane.b32.xlu0 %v315, 32
    %v322 = vpop.permute.xlu0 %321
    %v324 = vmul.f32 %v313, %v322
    %326 = vrot.lane.b32.xlu0 %v324, 32
    %v327 = vpop.permute.xlu0 %326
    %v329 = vadd.f32 %v319, %v327
    %v330 = vtanh.pop %v329
    %332 = vrot.lane.b32.xlu0 %v330, 32
    %v333 = vpop.permute.xlu0 %332
    %v335 = vmul.f32 %v313, %v333
    %v336 = vpack.c.bf16 %v335, %v335
    %v338 = vrot.slane %v336, 3
    %339 = vrot.lane.b32.xlu0 %v338, 64
    %v340 = vpop.permute.xlu0 %339
    %v342 = vsel %vm83, %v340, 0
    %344 = vmatpush.bf16.msra.mxu0 0
    %345 = vmatpush.bf16.msra.mxu0 0
    %346 = vmatpush.bf16.msra.mxu0 0
    %347 = vmatpush.bf16.msra.mxu0 0
    %348 = vmatpush.bf16.msra.mxu0 0
    %349 = vmatpush.bf16.msra.mxu0 0
    %350 = vmatpush.bf16.msra.mxu0 %v80
    %351 = vmatpush.bf16.msra.mxu0 %v79
    %352 = vmatmul.bf16.gmra.mxu0 %v342
    %v353 = vpop.f32.mrf.mxu0
    %v354 = vadd.f32 0.0, %v353
    %v355 = vpop.f32.mrf.mxu0
    %356 = vdwg.mxu0
    %v357 = vadd.f32 %v69, %v354
    %v358 = vxor.u32 %v357, 2147483648
    %v359 = vmul.f32 %v358, 1.442695
    %v360 = vpow.pop %v359
    %v361 = vadd.f32 %v360, 1.0
    %v362 = vrcp.pop %v361
    %v363 = vmul.f32 %v361, %v362
    %v364 = vsub.f32 1.0, %v363
    %v365 = vmul.f32 %v362, %v364
    %v366 = vadd.f32 %v362, %v365
    %vm367 = vweird.f32 %v361
    %vm368 = vweird.f32 %v362
    %vm369 = vmor %vm367, %vm368
    %v370 = vsel %vm369, %v362, %v366
    %v371 = vand.u32 2147483647, %v361
    %vm372 = vcmp.eq.f32.partialorder %v371, 8.507059e+37
    %v373 = vand.u32 %v361, 2147483648
    %v374 = vor.u32 1.1754944e-38, %v373
    %v375 = vsel %vm372, %v374, %v370
    %v376 = vmul.f32 1.0, %v375
    %v377 = vmul.f32 %v376, 2.0
    %v378 = vsub.f32 %v377, 1.0
    %v380 = vrot.slane %v329, 6
    %v382 = vmul.f32 %v376, %v380
    %384 = vrot.lane.b32.xlu0 %v378, 32
    %v385 = vpop.permute.xlu0 %384
    %v387 = vmul.f32 %v376, %v385
    %389 = vrot.lane.b32.xlu0 %v387, 32
    %v390 = vpop.permute.xlu0 %389
    %v392 = vadd.f32 %v382, %v390
    %v393 = vtanh.pop %v392
    %395 = vrot.lane.b32.xlu0 %v393, 32
    %v396 = vpop.permute.xlu0 %395
    %v398 = vmul.f32 %v376, %v396
    %v399 = vpack.c.bf16 %v398, %v398
    %401 = vrot.lane.b32.xlu0 %v399, 64
    %v402 = vpop.permute.xlu0 %401
    %v404 = vsel %vm83, %v402, 0
    %406 = vmatpush.bf16.msra.mxu0 0
    %407 = vmatpush.bf16.msra.mxu0 0
    %408 = vmatpush.bf16.msra.mxu0 0
    %409 = vmatpush.bf16.msra.mxu0 0
    %410 = vmatpush.bf16.msra.mxu0 0
    %411 = vmatpush.bf16.msra.mxu0 0
    %412 = vmatpush.bf16.msra.mxu0 %v80
    %413 = vmatpush.bf16.msra.mxu0 %v79
    %414 = vmatmul.bf16.gmra.mxu0 %v404
    %v415 = vpop.f32.mrf.mxu0
    %v416 = vadd.f32 0.0, %v415
    %v417 = vpop.f32.mrf.mxu0
    %418 = vdwg.mxu0
    %v420 = vrot.slane %v416, 6
    %v422 = vadd.f32 %v69, %v420
    %v423 = vxor.u32 %v422, 2147483648
    %v424 = vmul.f32 %v423, 1.442695
    %v425 = vpow.pop %v424
    %v426 = vadd.f32 %v425, 1.0
    %v427 = vrcp.pop %v426
    %v428 = vmul.f32 %v426, %v427
    %v429 = vsub.f32 1.0, %v428
    %v430 = vmul.f32 %v427, %v429
    %v431 = vadd.f32 %v427, %v430
    %vm432 = vweird.f32 %v426
    %vm433 = vweird.f32 %v427
    %vm434 = vmor %vm432, %vm433
    %v435 = vsel %vm434, %v427, %v431
    %v436 = vand.u32 2147483647, %v426
    %vm437 = vcmp.eq.f32.partialorder %v436, 8.507059e+37
    %v438 = vand.u32 %v426, 2147483648
    %v439 = vor.u32 1.1754944e-38, %v438
    %v440 = vsel %vm437, %v439, %v435
    %v441 = vmul.f32 1.0, %v440
    %v442 = vmul.f32 %v441, 2.0
    %v443 = vsub.f32 %v442, 1.0
    %v445 = vrot.slane %v392, 6
    %v447 = vmul.f32 %v441, %v445
    %449 = vrot.lane.b32.xlu0 %v443, 32
    %v450 = vpop.permute.xlu0 %449
    %v452 = vmul.f32 %v441, %v450
    %454 = vrot.lane.b32.xlu0 %v452, 32
    %v455 = vpop.permute.xlu0 %454
    %v457 = vadd.f32 %v447, %v455
    %v458 = vtanh.pop %v457
    %460 = vrot.lane.b32.xlu0 %v458, 32
    %v461 = vpop.permute.xlu0 %460
    %v463 = vmul.f32 %v441, %v461
    %v464 = vpack.c.bf16 %v463, %v463
    %v466 = vrot.slane %v464, 1
    %467 = vrot.lane.b32.xlu0 %v466, 64
    %v468 = vpop.permute.xlu0 %467
    %v470 = vsel %vm83, %v468, 0
    %472 = vmatpush.bf16.msra.mxu0 0
    %473 = vmatpush.bf16.msra.mxu0 0
    %474 = vmatpush.bf16.msra.mxu0 0
    %475 = vmatpush.bf16.msra.mxu0 0
    %476 = vmatpush.bf16.msra.mxu0 0
    %477 = vmatpush.bf16.msra.mxu0 0
    %478 = vmatpush.bf16.msra.mxu0 %v80
    %479 = vmatpush.bf16.msra.mxu0 %v79
    %480 = vmatmul.bf16.gmra.mxu0 %v470
    %v481 = vpop.f32.mrf.mxu0
    %v482 = vadd.f32 0.0, %v481
    %v483 = vpop.f32.mrf.mxu0
    %484 = vdwg.mxu0
    %v486 = vrot.slane %v482, 4
    %v488 = vadd.f32 %v69, %v486
    %v489 = vxor.u32 %v488, 2147483648
    %v490 = vmul.f32 %v489, 1.442695
    %v491 = vpow.pop %v490
    %v492 = vadd.f32 %v491, 1.0
    %v493 = vrcp.pop %v492
    %v494 = vmul.f32 %v492, %v493
    %v495 = vsub.f32 1.0, %v494
    %v496 = vmul.f32 %v493, %v495
    %v497 = vadd.f32 %v493, %v496
    %vm498 = vweird.f32 %v492
    %vm499 = vweird.f32 %v493
    %vm500 = vmor %vm498, %vm499
    %v501 = vsel %vm500, %v493, %v497
    %v502 = vand.u32 2147483647, %v492
    %vm503 = vcmp.eq.f32.partialorder %v502, 8.507059e+37
    %v504 = vand.u32 %v492, 2147483648
    %v505 = vor.u32 1.1754944e-38, %v504
    %v506 = vsel %vm503, %v505, %v501
    %v507 = vmul.f32 1.0, %v506
    %v508 = vmul.f32 %v507, 2.0
    %v509 = vsub.f32 %v508, 1.0
    %v511 = vrot.slane %v457, 6
    %v513 = vmul.f32 %v507, %v511
    %515 = vrot.lane.b32.xlu0 %v509, 32
    %v516 = vpop.permute.xlu0 %515
    %v518 = vmul.f32 %v507, %v516
    %520 = vrot.lane.b32.xlu0 %v518, 32
    %v521 = vpop.permute.xlu0 %520
    %v523 = vadd.f32 %v513, %v521
    %v524 = vtanh.pop %v523
    %526 = vrot.lane.b32.xlu0 %v524, 32
    %v527 = vpop.permute.xlu0 %526
    %v529 = vmul.f32 %v507, %v527
    %v530 = vpack.c.bf16 %v529, %v529
    %v532 = vrot.slane %v530, 2
    %533 = vrot.lane.b32.xlu0 %v532, 64
    %v534 = vpop.permute.xlu0 %533
    %v536 = vsel %vm83, %v534, 0
    %538 = vmatpush.bf16.msra.mxu0 0
    %539 = vmatpush.bf16.msra.mxu0 0
    %540 = vmatpush.bf16.msra.mxu0 0
    %541 = vmatpush.bf16.msra.mxu0 0
    %542 = vmatpush.bf16.msra.mxu0 0
    %543 = vmatpush.bf16.msra.mxu0 0
    %544 = vmatpush.bf16.msra.mxu0 %v80
    %545 = vmatpush.bf16.msra.mxu0 %v79
    %546 = vmatmul.bf16.gmra.mxu0 %v536
    %v547 = vpop.f32.mrf.mxu0
    %v548 = vadd.f32 0.0, %v547
    %v549 = vpop.f32.mrf.mxu0
    %550 = vdwg.mxu0
    %v552 = vrot.slane %v548, 2
    %v554 = vadd.f32 %v69, %v552
    %v555 = vxor.u32 %v554, 2147483648
    %v556 = vmul.f32 %v555, 1.442695
    %v557 = vpow.pop %v556
    %v558 = vadd.f32 %v557, 1.0
    %v559 = vrcp.pop %v558
    %v560 = vmul.f32 %v558, %v559
    %v561 = vsub.f32 1.0, %v560
    %v562 = vmul.f32 %v559, %v561
    %v563 = vadd.f32 %v559, %v562
    %vm564 = vweird.f32 %v558
    %vm565 = vweird.f32 %v559
    %vm566 = vmor %vm564, %vm565
    %v567 = vsel %vm566, %v559, %v563
    %v568 = vand.u32 2147483647, %v558
    %vm569 = vcmp.eq.f32.partialorder %v568, 8.507059e+37
    %v570 = vand.u32 %v558, 2147483648
    %v571 = vor.u32 1.1754944e-38, %v570
    %v572 = vsel %vm569, %v571, %v567
    %v573 = vmul.f32 1.0, %v572
    %v574 = vmul.f32 %v573, 2.0
    %v575 = vsub.f32 %v574, 1.0
    %v577 = vrot.slane %v523, 6
    %v579 = vmul.f32 %v573, %v577
    %581 = vrot.lane.b32.xlu0 %v575, 32
    %v582 = vpop.permute.xlu0 %581
    %v584 = vmul.f32 %v573, %v582
    %586 = vrot.lane.b32.xlu0 %v584, 32
    %v587 = vpop.permute.xlu0 %586
    %v589 = vadd.f32 %v579, %v587
    %v590 = vtanh.pop %v589
    %592 = vrot.lane.b32.xlu0 %v590, 32
    %v593 = vpop.permute.xlu0 %592
    %v595 = vmul.f32 %v573, %v593
    %v597 = vperm.slane %v34, 0
    %v600 = vrot.slane %v595, 6
    %601 = vrot.lane.b32.xlu0 %v600, 64
    %v602 = vpop.permute.xlu0 %601
    %v603 = vsel %vm83, %v602, 0
    %605 = vmatpush.msra.mxu0 0.0
    %606 = vmatpush.msra.mxu0 0.0
    %607 = vmatpush.msra.mxu0 0.0
    %608 = vmatpush.msra.mxu0 0.0
    %609 = vmatpush.msra.mxu0 0.0
    %610 = vmatpush.msra.mxu0 0.0
    %611 = vmatpush.msra.mxu0 0.0
    %612 = vmatpush.msra.mxu0 0.0
    %613 = vmatpush.msra.mxu0 0.0
    %614 = vmatpush.msra.mxu0 0.0
    %615 = vmatpush.msra.mxu0 0.0
    %616 = vmatpush.msra.mxu0 0.0
    %617 = vmatpush.msra.mxu0 %v33
    %618 = vmatpush.msra.mxu0 %v32
    %619 = vmatpush.msra.mxu0 %v31
    %620 = vmatpush.msra.mxu0 %v30
    %621 = vmatmul.f32.gmra.mxu0 %v603
    %v622 = vpop.f32.mrf.mxu0
    %v623 = vadd.f32 %v597, %v622
    %624 = vdwg.mxu0
    %vm625 = vcmask 9216
    %626 = vst.msk [vmem:[#allocation2] sm:$0x3] %vm625, %v623
    // Predicated region
    $region26: #{tpu_custom_call.1} parent=1 // pred_check
      _
    $region27: #{tpu_custom_call.1} parent=1 // pred_check_branch
      %628 = sbr.rel (0) target = $region29
    $region28: #{tpu_custom_call.1} parent=1 // pred_region
      %630 = vsyncadd [#allocation3], 0
      %s632 = sshll.u32 [#allocation2], 4
      %s633 = int_to_ptr.vmem [resolvable:$true] %s632
      %s634 = sshll.u32 %s6, 4
      %s635 = int_to_ptr.hbm [resolvable:$true] %s634
      %637 = dma.vmem_to_hbm [thread:$0]  %s633, 32, %s635, [#allocation3]
    $region29: #{tpu_custom_call.1} parent=1 // pred_fallthru
      _
    // Predicated region
    $region30: #{tpu_custom_call.1} parent=1 // pred_check
      _
    $region31: #{tpu_custom_call.1} parent=1 // pred_check_branch
      %639 = sbr.rel (0) target = $region33
    $region32: #{tpu_custom_call.1} parent=1 // pred_region
      %641 = dma.done [#allocation3], 32
    $region33: #{tpu_custom_call.1} parent=1 // pred_fallthru
      _
    %642 = vsyncpa [#allocation3], 1

</llo_original>
